<compile_context>
chip_gen: v6e
topology: v6e:2x2x1
jax: 0.10.0
libtpu: 0.0.40
codegen_flags: <defaults>
</compile_context>

<pallas_src>
import jax
import jax.numpy as jnp
from jax.experimental import pallas as pl
from jax.experimental.pallas import tpu as pltpu


def _identity_kernel(w_ref, x_ref, o_ref):
    # w_ref lives in SMEM (scalar parameter); x_ref/o_ref are VMEM tiles.
    # Two VPU ops per element, fully hidden under the HBM DMA (mem-bound).
    w = w_ref[0]
    res = (x_ref[...] - w) + w
    o_ref[...] = res.astype(o_ref.dtype)


def identity_forward(x: jax.Array, weight: jax.Array) -> jax.Array:
    """x: arbitrary-shape tensor (e.g. NCHW); weight: shape (1,) f32 parameter."""
    orig_shape = x.shape
    dtype = x.dtype
    n = x.size

    itemsize = jnp.dtype(dtype).itemsize
    # dtype-aware sublane granularity (packed tiles for sub-32-bit dtypes)
    sublane = {4: 8, 2: 16, 1: 32}.get(itemsize, 8)

    # Widest lane-dense width that divides n exactly -> zero padding needed.
    lanes = next((c for c in (1024, 512, 256, 128) if n % c == 0), None)
    if lanes is None:
        # TODO(synk): sizes not divisible by 128 fall back to a fused XLA
        # elementwise op (still exactly 1x HBM traffic) instead of wrapping the
        # Pallas kernel in a full-tensor pad + slice.
        w = weight[0]
        return ((x - w) + w).astype(dtype)

    rows = n // lanes

    TR_MAX = 1024        # up to 4 MiB f32 / 2 MiB bf16 input tile
    TARGET_STEPS = 4     # >= 2 grid steps per TensorCore on v7x megacore
    if rows <= sublane:
        # Full-extent block along rows: exempt from the (8,128) divisibility
        # rule, single grid step (tiny input, nothing to pipeline/shard).
        tr = rows
    else:
        tr = max(sublane, -(-rows // TARGET_STEPS))          # ceil-div
        tr = ((tr + sublane - 1) // sublane) * sublane        # sublane multiple
        tr = min(tr, TR_MAX)

    grid = (pl.cdiv(rows, tr),)   # partial last block is masked by Pallas

    x2d = x.reshape(rows, lanes)

    out2d = pl.pallas_call(
        _identity_kernel,
        out_shape=jax.ShapeDtypeStruct((rows, lanes), dtype),
        grid=grid,
        in_specs=[
            # scalar weight, resident in SMEM for every grid step
            pl.BlockSpec(memory_space=pltpu.MemorySpace.SMEM),
            # row-tiled, lane-dense input slab
            pl.BlockSpec((tr, lanes), lambda i: (i, 0)),
        ],
        out_specs=pl.BlockSpec((tr, lanes), lambda i: (i, 0)),
        compiler_params=pltpu.CompilerParams(
            dimension_semantics=("parallel",),
            vmem_limit_bytes=48 * 1024 * 1024,
        ),
        cost_estimate=pl.CostEstimate(
            flops=2 * n,
            transcendentals=0,
            bytes_accessed=2 * n * itemsize,
        ),
    )(weight, x2d)

    return out2d.reshape(orig_shape)


if __name__ == "__main__":
    key = jax.random.PRNGKey(0)
    kx, kw = jax.random.split(key)

    # Deterministic parameter init (torch.randn(1) analogue).
    weight = jax.random.normal(kw, (1,), dtype=jnp.float32)

    # Small NCHW input consistent with the module's forward.
    x = jax.random.normal(kx, (2, 4, 16, 16), dtype=jnp.float32)

    fwd = jax.jit(identity_forward)
    y = fwd(x, weight)
    jax.block_until_ready(y)

    # Sanity check against the reference computation done in plain JAX.
    ref = (x - weight[0]) + weight[0]
    assert y.shape == x.shape and y.dtype == x.dtype
    assert jnp.allclose(y, ref), "mismatch vs reference"

    print("KERNEL_OK")
</pallas_src>

<mosaic_0001>
module attributes {stable_mosaic.version = 11 : i64} {
  func.func @_identity_kernel(%arg0: i32, %arg1: memref<1xf32, #tpu.memory_space<smem>>, %arg2: memref<2x1024xf32, #tpu.memory_space<vmem>>, %arg3: memref<2x1024xf32, #tpu.memory_space<vmem>>) attributes {dimension_semantics = [#tpu.dimension_semantics<parallel>], iteration_bounds = array<i64: 1>, scalar_prefetch = 0 : i64, scratch_operands = 0 : i64, tpu.core_type = #tpu.core_type<tc>, window_params = [{transform_indices = @transform_0, window_bounds = array<i64: 1>}, {transform_indices = @transform_1, window_bounds = array<i64: 2, 1024>}, {transform_indices = @transform_2, window_bounds = array<i64: 2, 1024>}]} {
    %c0 = arith.constant 0 : index
    %0 = memref.load %arg1[%c0] : memref<1xf32, #tpu.memory_space<smem>>
    %c0_0 = arith.constant 0 : index
    %c0_1 = arith.constant 0 : index
    %1 = vector.load %arg2[%c0_0, %c0_1] : memref<2x1024xf32, #tpu.memory_space<vmem>>, vector<2x1024xf32>
    %2 = vector.broadcast %0 : f32 to vector<2x1024xf32>
    %3 = arith.subf %1, %2 : vector<2x1024xf32>
    %4 = vector.broadcast %0 : f32 to vector<2x1024xf32>
    %5 = arith.addf %3, %4 : vector<2x1024xf32>
    %c0_2 = arith.constant 0 : index
    %c0_3 = arith.constant 0 : index
    %6 = vector.load %arg3[%c0_2, %c0_3] : memref<2x1024xf32, #tpu.memory_space<vmem>>, vector<2x1024xf32>
    tpu.vector_store %arg3[%c0_2, %c0_3], %5 {strides = array<i32>} : memref<2x1024xf32, #tpu.memory_space<vmem>>, vector<2x1024xf32>,
    return
  }
  func.func @transform_0(%arg0: i32) -> i32 {
    %c0_i32 = arith.constant 0 : i32
    %c0_i32_0 = arith.constant 0 : i32
    return %c0_i32 : i32
  }
  func.func @transform_1(%arg0: i32) -> (i32, i32) {
    %c0_i32 = arith.constant 0 : i32
    %c0_i32_0 = arith.constant 0 : i32
    return %arg0, %c0_i32 : i32, i32
  }
  func.func @transform_2(%arg0: i32) -> (i32, i32) {
    %c0_i32 = arith.constant 0 : i32
    %c0_i32_0 = arith.constant 0 : i32
    return %arg0, %c0_i32 : i32, i32
  }
}

</mosaic_0001>

<llo_original>
// kernel: identity_forward.1
$region0: #{identity_forward.1}
  #allocation0 [shape = 'u32[]', space=smem, size = 0x4, offset = 0x4, fixed_abs, tag = 'smem constant byte address 0x4 - core index']
  #allocation1 [shape = 'u32[144,128]{1,0:T(1,128)}', space=vmem, size = 0x12000, scoped, tag = 'internal scratch']
  #allocation2 [shape = 'f32[1]{0:T(128)S(6)}', space=smem, size = 0x200, scoped, tag = 'scoped memory for identity_forward.1']
  %s0 = inlined_call_operand.<no memory space> [shape: f32[1], index: 0, kind: input, shape index: {}]
  %s1 = inlined_call_operand.vmem [shape: f32[2,1024], index: 1, kind: input, shape index: {}]
  %s2 = inlined_call_operand.vmem [shape: f32[2,1024], index: 2, kind: output, shape index: {}]
  %s3 = sld [smem:[#allocation0]]
  $region18: #{identity_forward.1} parent=0
    _
  %s5 = ssub.s32 1, %s3
  %s6 = scalar_select 0, %s5, %s3
  %7 = sst [smem:[#allocation2]] %s0
  // Predicated region
  $region2: #{identity_forward.1} parent=0 // pred_check
    _
  $region3: #{identity_forward.1} parent=0 // pred_check_branch
    %9 = sbr.rel (0) target = $region5
  $region4: #{identity_forward.1} parent=0 // pred_region
    _
  $region5: #{identity_forward.1} parent=0 // pred_fallthru
    _
  // Predicated region
  $region6: #{identity_forward.1} parent=0 // pred_check
    _
  $region7: #{identity_forward.1} parent=0 // pred_check_branch
    %11 = sbr.rel (0) target = $region9
  $region8: #{identity_forward.1} parent=0 // pred_region
    _
  $region9: #{identity_forward.1} parent=0 // pred_fallthru
    _
  %s12 = sld [smem:[#allocation2]]
  %v13 = vld [vmem:[%s1] sm:$0xff]
  %v14 = vld [vmem:[%s1 + $0x8] sm:$0xff]
  %v15 = vstv %s12
  %v16 = vsub.f32 %v13, %v15
  %v17 = vsub.f32 %v14, %v15
  %v18 = vadd.f32 %v16, %v15
  %v19 = vadd.f32 %v17, %v15
  %20 = vst [vmem:[%s2] sm:$0xff] %v18
  %21 = vst [vmem:[%s2 + $0x8] sm:$0xff] %v19
  // Predicated region
  $region10: #{identity_forward.1} parent=0 // pred_check
    _
  $region11: #{identity_forward.1} parent=0 // pred_check_branch
    %23 = sbr.rel (0) target = $region13
  $region12: #{identity_forward.1} parent=0 // pred_region
    _
  $region13: #{identity_forward.1} parent=0 // pred_fallthru
    _
  // Predicated region
  $region14: #{identity_forward.1} parent=0 // pred_check
    _
  $region15: #{identity_forward.1} parent=0 // pred_check_branch
    %25 = sbr.rel (0) target = $region17
  $region16: #{identity_forward.1} parent=0 // pred_region
    _
  $region17: #{identity_forward.1} parent=0 // pred_fallthru
    _

</llo_original>
